<compile_context>
chip_gen: v5e
topology: v5e:2x2
jax: 0.10.0
libtpu: 0.0.40
codegen_flags: <defaults>
</compile_context>

<pallas_src>
import functools

import jax
import jax.numpy as jnp
import numpy as np
from jax import lax
from jax.experimental import pallas as pl
from jax.experimental.pallas import tpu as pltpu


def _round_up(x, n):
    return ((x + n - 1) // n) * n


# ------------------------------ Pallas kernel ------------------------------

# dot_general dimension_numbers for A @ B^T: contract the last dim of both
# operands (native MXU "NT" matmul, no data movement).
_NT = (((1,), (1,)), ((), ()))


def _mlp_kernel(x_ref,
                w_in_ref, b_in_ref,
                w1a_ref, b1a_ref, w2a_ref, b2a_ref,   # bottleneck block 1
                w1b_ref, b1b_ref, w2b_ref, b2b_ref,   # bottleneck block 2
                w_out_ref, b_out_ref,
                o_ref):
    # x_ref: (tm, H) in the caller's dtype (f32); cast to the matmul compute
    # dtype in-register (rides free under MXU slack).  Activations then live
    # "transposed" as [features, rows] so rows ride the lane axis and the
    # Linear(hidden -> 1) head becomes a VPU multiply + sublane reduce that
    # yields a lane-dense (1, tm) output row (no masked 1-lane stores, no
    # wasted 1-column MXU pass).
    cdt = w_in_ref.dtype
    x = x_ref[...].astype(cdt)

    # stem: (hidden, H) x (tm, H) -> (hidden, tm); NT contraction on the MXU,
    # no materialized transpose of the x tile.
    h = lax.dot_general(w_in_ref[...], x, _NT, preferred_element_type=jnp.float32)
    h = jnp.maximum(h + b_in_ref[...], 0.0)

    # residual bottleneck block 1 (weights are [out, in], activations are
    # [in, rows]: contraction is already on adjacent dims -> plain jnp.dot).
    t = jnp.dot(w1a_ref[...], h.astype(cdt), preferred_element_type=jnp.float32)
    t = jnp.maximum(t + b1a_ref[...], 0.0)
    h = h + jnp.dot(w2a_ref[...], t.astype(cdt),
                    preferred_element_type=jnp.float32) + b2a_ref[...]
    h = jnp.maximum(h, 0.0)

    # residual bottleneck block 2
    t = jnp.dot(w1b_ref[...], h.astype(cdt), preferred_element_type=jnp.float32)
    t = jnp.maximum(t + b1b_ref[...], 0.0)
    h = h + jnp.dot(w2b_ref[...], t.astype(cdt),
                    preferred_element_type=jnp.float32) + b2b_ref[...]
    h = jnp.maximum(h, 0.0)

    # head: Linear(hidden -> 1) as VPU multiply + sublane reduce.
    o_ref[...] = jnp.sum(h * w_out_ref[...], axis=0, keepdims=True) + b_out_ref[...]


# ----------------------------- spec / size helpers --------------------------


def _resident_spec(shape, buffers):
    """Whole-array block, invariant over the row grid (VMEM-resident)."""
    index_map = lambda i: tuple(0 for _ in shape)
    if buffers:
        # Grid-invariant operand: double-buffering it only wastes VMEM.
        return pl.BlockSpec(shape, index_map, pipeline_mode=pl.Buffered(buffers))
    return pl.BlockSpec(shape, index_map)


def _chip_defaults():
    """Pick (row tile, vmem_limit_bytes) from the chip's VMEM capacity."""
    try:
        vmem = pltpu.get_tpu_info().vmem_capacity_bytes
    except Exception:
        vmem = 64 * 1024 * 1024                      # assume v7x-sized (safe)
    if vmem >= 100 * 1024 * 1024:                    # v5e / v6e / v5p: 128 MiB
        return 1024, 100 * 1024 * 1024
    return 512, 48 * 1024 * 1024                     # v7x: 64 MiB per TC


def _pick_row_tile(m, tm_target):
    tm = _round_up(max(128, min(tm_target, 4096)), 128)
    if m > 256:
        # keep >= 2 row blocks so the "parallel" grid axis can shard across
        # both TensorCores on v7x (harmless on single-TC chips)
        tm = min(tm, max(128, _round_up((m + 1) // 2, 128)))
    if m <= tm:
        tm = m                                       # single full-array block
    return tm


# ------------------------------- forward call -------------------------------


@functools.partial(
    jax.jit, static_argnames=("tm", "use_bf16", "weight_buffers", "vmem_limit"))
def _forward_impl(pred_features, params, *, tm, use_bf16, weight_buffers,
                  vmem_limit):
    n, l, hdim = pred_features.shape
    m = n * l
    tm = _pick_row_tile(m, tm)
    grid = pl.cdiv(m, tm)

    # No wrapper-side astype / pad: reshape only (free for contiguous dims).
    # The ragged last row block (if any) reads padding rows and its
    # out-of-bounds output columns are discarded by Pallas; rows are fully
    # independent so this is safe (no cross-row reduction in the kernel).
    x = pred_features.reshape(m, hdim)

    (w_in, b_in, w1a, b1a, w2a, b2a,
     w1b, b1b, w2b, b2b, w_out, b_out) = params

    cdt = jnp.bfloat16 if use_bf16 else jnp.float32
    w_in_c, w1a_c, w2a_c, w1b_c, w2b_c = (
        w.astype(cdt) for w in (w_in, w1a, w2a, w1b, w2b))

    args = (x,
            w_in_c, b_in.astype(jnp.float32),
            w1a_c, b1a.astype(jnp.float32),
            w2a_c, b2a.astype(jnp.float32),
            w1b_c, b1b.astype(jnp.float32),
            w2b_c, b2b.astype(jnp.float32),
            w_out.astype(jnp.float32), b_out.astype(jnp.float32))

    in_specs = [pl.BlockSpec((tm, hdim), lambda i: (i, 0))]
    in_specs += [_resident_spec(a.shape, weight_buffers) for a in args[1:]]

    out = pl.pallas_call(
        _mlp_kernel,
        out_shape=jax.ShapeDtypeStruct((1, m), jnp.float32),
        grid_spec=pltpu.PrefetchScalarGridSpec(
            num_scalar_prefetch=0,
            grid=(grid,),
            in_specs=in_specs,
            out_specs=pl.BlockSpec((1, tm), lambda i: (0, i)),
        ),
        compiler_params=pltpu.CompilerParams(
            dimension_semantics=("parallel",),
            vmem_limit_bytes=vmem_limit,
        ),
    )(*args)

    return out[0].reshape(n, l)


def mask_generating_forward(pred_features, params, *, tm=None, use_bf16=True):
    """pred_features: [N, L, H] float32 -> mask_logits: [N, L] float32."""
    tm_default, vmem_limit = _chip_defaults()
    if tm is None:
        tm = tm_default
    try:
        return _forward_impl(pred_features, params, tm=tm, use_bf16=use_bf16,
                             weight_buffers=1, vmem_limit=vmem_limit)
    except Exception:
        # TODO(synk): pl.Buffered(1) single-buffering rejected by this jax
        # version -- fall back to default double-buffered weight specs.
        return _forward_impl(pred_features, params, tm=tm, use_bf16=use_bf16,
                             weight_buffers=0, vmem_limit=vmem_limit)


# ------------------------- deterministic parameters ------------------------


def init_params(hidden_size, mlp_hidden_dim, mlp_bottleneck_dim, key):
    ks = jax.random.split(key, 12)

    def lin(kw, kb, fan_in, fan_out):
        # torch nn.Linear layout: weight [out, in]; bias stored as a column
        # [out, 1] so it lane-broadcasts in the transposed kernel dataflow.
        w = jax.random.normal(kw, (fan_out, fan_in), jnp.float32) / np.sqrt(fan_in)
        b = 0.1 * jax.random.normal(kb, (fan_out, 1), jnp.float32)
        return w, b

    w_in, b_in = lin(ks[0], ks[1], hidden_size, mlp_hidden_dim)
    w1a, b1a = lin(ks[2], ks[3], mlp_hidden_dim, mlp_bottleneck_dim)
    w2a, b2a = lin(ks[4], ks[5], mlp_bottleneck_dim, mlp_hidden_dim)
    w1b, b1b = lin(ks[6], ks[7], mlp_hidden_dim, mlp_bottleneck_dim)
    w2b, b2b = lin(ks[8], ks[9], mlp_bottleneck_dim, mlp_hidden_dim)
    w_out_row, b_out = lin(ks[10], ks[11], mlp_hidden_dim, 1)
    w_out = w_out_row.T                      # (hidden, 1) column for the head
    return (w_in, b_in, w1a, b1a, w2a, b2a, w1b, b1b, w2b, b2b, w_out, b_out)


def reference_forward(pred_features, params, use_bf16=True):
    """Pure-JAX row-major reference mirroring the kernel's precision contract
    (bf16 matmul inputs, f32 accumulation, f32 residual/bias/ReLU/head)."""
    (w_in, b_in, w1a, b1a, w2a, b2a,
     w1b, b1b, w2b, b2b, w_out, b_out) = params
    n, l, hdim = pred_features.shape
    x = pred_features.reshape(n * l, hdim)
    cdt = jnp.bfloat16 if use_bf16 else jnp.float32

    def mm(a, w):  # a [rows, in], w [out, in] -> [rows, out], f32 accumulation
        return jnp.dot(a.astype(cdt), w.astype(cdt).T,
                       preferred_element_type=jnp.float32)

    h = jnp.maximum(mm(x, w_in) + b_in.T, 0.0)
    t = jnp.maximum(mm(h, w1a) + b1a.T, 0.0)
    h = jnp.maximum(h + mm(t, w2a) + b2a.T, 0.0)
    t = jnp.maximum(mm(h, w1b) + b1b.T, 0.0)
    h = jnp.maximum(h + mm(t, w2b) + b2b.T, 0.0)
    o = h @ w_out + b_out                    # head stays f32, like the kernel
    return o.reshape(n, l)


# ----------------------------------- main ----------------------------------


if __name__ == "__main__":
    # small shapes consistent with the module: batch N=2, seq L=8, hidden=32
    N, L, HIDDEN = 2, 8, 32
    MLP_HIDDEN, MLP_BOTTLENECK = 16, 8

    key = jax.random.PRNGKey(0)
    k_x, k_p = jax.random.split(key)

    pred_features = jax.random.normal(k_x, (N, L, HIDDEN), jnp.float32)
    params = init_params(HIDDEN, MLP_HIDDEN, MLP_BOTTLENECK, k_p)

    mask_logits = mask_generating_forward(pred_features, params)
    mask_logits = jax.block_until_ready(mask_logits)

    ref = reference_forward(pred_features, params)
    np.testing.assert_allclose(np.asarray(mask_logits), np.asarray(ref),
                               rtol=1e-4, atol=1e-4)
    assert mask_logits.shape == (N, L)

    print("KERNEL_OK")
</pallas_src>

<mosaic_0001>
module attributes {stable_mosaic.version = 11 : i64} {
  func.func @_mlp_kernel(%arg0: i32, %arg1: memref<16x32xf32, #tpu.memory_space<vmem>>, %arg2: memref<16x32xbf16, #tpu.memory_space<vmem>>, %arg3: memref<16x1xf32, #tpu.memory_space<vmem>>, %arg4: memref<8x16xbf16, #tpu.memory_space<vmem>>, %arg5: memref<8x1xf32, #tpu.memory_space<vmem>>, %arg6: memref<16x8xbf16, #tpu.memory_space<vmem>>, %arg7: memref<16x1xf32, #tpu.memory_space<vmem>>, %arg8: memref<8x16xbf16, #tpu.memory_space<vmem>>, %arg9: memref<8x1xf32, #tpu.memory_space<vmem>>, %arg10: memref<16x8xbf16, #tpu.memory_space<vmem>>, %arg11: memref<16x1xf32, #tpu.memory_space<vmem>>, %arg12: memref<16x1xf32, #tpu.memory_space<vmem>>, %arg13: memref<1x1xf32, #tpu.memory_space<vmem>>, %arg14: memref<1x16xf32, #tpu.memory_space<vmem>>) attributes {dimension_semantics = [#tpu.dimension_semantics<parallel>], iteration_bounds = array<i64: 1>, scalar_prefetch = 0 : i64, scratch_operands = 0 : i64, tpu.core_type = #tpu.core_type<tc>, window_params = [{transform_indices = @transform_0, window_bounds = array<i64: 16, 32>}, {pipeline_mode = #tpu.pipeline_mode<synchronous>, transform_indices = @transform_1, window_bounds = array<i64: 16, 32>}, {pipeline_mode = #tpu.pipeline_mode<synchronous>, transform_indices = @transform_2, window_bounds = array<i64: 16, 1>}, {pipeline_mode = #tpu.pipeline_mode<synchronous>, transform_indices = @transform_3, window_bounds = array<i64: 8, 16>}, {pipeline_mode = #tpu.pipeline_mode<synchronous>, transform_indices = @transform_4, window_bounds = array<i64: 8, 1>}, {pipeline_mode = #tpu.pipeline_mode<synchronous>, transform_indices = @transform_5, window_bounds = array<i64: 16, 8>}, {pipeline_mode = #tpu.pipeline_mode<synchronous>, transform_indices = @transform_6, window_bounds = array<i64: 16, 1>}, {pipeline_mode = #tpu.pipeline_mode<synchronous>, transform_indices = @transform_7, window_bounds = array<i64: 8, 16>}, {pipeline_mode = #tpu.pipeline_mode<synchronous>, transform_indices = @transform_8, window_bounds = array<i64: 8, 1>}, {pipeline_mode = #tpu.pipeline_mode<synchronous>, transform_indices = @transform_9, window_bounds = array<i64: 16, 8>}, {pipeline_mode = #tpu.pipeline_mode<synchronous>, transform_indices = @transform_10, window_bounds = array<i64: 16, 1>}, {pipeline_mode = #tpu.pipeline_mode<synchronous>, transform_indices = @transform_11, window_bounds = array<i64: 16, 1>}, {pipeline_mode = #tpu.pipeline_mode<synchronous>, transform_indices = @transform_12, window_bounds = array<i64: 1, 1>}, {transform_indices = @transform_13, window_bounds = array<i64: 1, 16>}]} {
    %c0 = arith.constant 0 : index
    %c0_0 = arith.constant 0 : index
    %0 = vector.load %arg1[%c0, %c0_0] : memref<16x32xf32, #tpu.memory_space<vmem>>, vector<16x32xf32>
    %1 = arith.truncf %0 : vector<16x32xf32> to vector<16x32xbf16>
    %c0_1 = arith.constant 0 : index
    %c0_2 = arith.constant 0 : index
    %2 = vector.load %arg2[%c0_1, %c0_2] : memref<16x32xbf16, #tpu.memory_space<vmem>>, vector<16x32xbf16>
    %cst = arith.constant dense<0.000000e+00> : vector<16x16xf32>
    %3 = tpu.matmul %2, %1, %cst {dimension_numbers = #tpu.dot_dimension_numbers<[1], [1], [0], [0], [0, 0, 1, 0], [], []>} : vector<16x32xbf16>, vector<16x32xbf16>, vector<16x16xf32> -> vector<16x16xf32>
    %c0_3 = arith.constant 0 : index
    %c0_4 = arith.constant 0 : index
    %4 = vector.load %arg3[%c0_3, %c0_4] : memref<16x1xf32, #tpu.memory_space<vmem>>, vector<16x1xf32>
    %5 = vector.broadcast %4 : vector<16x1xf32> to vector<16x16xf32>
    %6 = arith.addf %3, %5 : vector<16x16xf32>
    %cst_5 = arith.constant 0.000000e+00 : f32
    %7 = vector.broadcast %cst_5 : f32 to vector<16x16xf32>
    %8 = arith.maximumf %6, %7 : vector<16x16xf32>
    %c0_6 = arith.constant 0 : index
    %c0_7 = arith.constant 0 : index
    %9 = vector.load %arg4[%c0_6, %c0_7] : memref<8x16xbf16, #tpu.memory_space<vmem>>, vector<8x16xbf16>
    %10 = arith.truncf %8 : vector<16x16xf32> to vector<16x16xbf16>
    %cst_8 = arith.constant dense<0.000000e+00> : vector<8x16xf32>
    %11 = tpu.matmul %9, %10, %cst_8 {dimension_numbers = #tpu.dot_dimension_numbers<[1], [0], [0], [1], [0, 0, 1, 1], [], []>} : vector<8x16xbf16>, vector<16x16xbf16>, vector<8x16xf32> -> vector<8x16xf32>
    %c0_9 = arith.constant 0 : index
    %c0_10 = arith.constant 0 : index
    %12 = vector.load %arg5[%c0_9, %c0_10] : memref<8x1xf32, #tpu.memory_space<vmem>>, vector<8x1xf32>
    %13 = vector.broadcast %12 : vector<8x1xf32> to vector<8x16xf32>
    %14 = arith.addf %11, %13 : vector<8x16xf32>
    %cst_11 = arith.constant 0.000000e+00 : f32
    %15 = vector.broadcast %cst_11 : f32 to vector<8x16xf32>
    %16 = arith.maximumf %14, %15 : vector<8x16xf32>
    %c0_12 = arith.constant 0 : index
    %c0_13 = arith.constant 0 : index
    %17 = vector.load %arg6[%c0_12, %c0_13] : memref<16x8xbf16, #tpu.memory_space<vmem>>, vector<16x8xbf16>
    %18 = arith.truncf %16 : vector<8x16xf32> to vector<8x16xbf16>
    %cst_14 = arith.constant dense<0.000000e+00> : vector<16x16xf32>
    %19 = tpu.matmul %17, %18, %cst_14 {dimension_numbers = #tpu.dot_dimension_numbers<[1], [0], [0], [1], [0, 0, 1, 1], [], []>} : vector<16x8xbf16>, vector<8x16xbf16>, vector<16x16xf32> -> vector<16x16xf32>
    %20 = arith.addf %8, %19 : vector<16x16xf32>
    %c0_15 = arith.constant 0 : index
    %c0_16 = arith.constant 0 : index
    %21 = vector.load %arg7[%c0_15, %c0_16] : memref<16x1xf32, #tpu.memory_space<vmem>>, vector<16x1xf32>
    %22 = vector.broadcast %21 : vector<16x1xf32> to vector<16x16xf32>
    %23 = arith.addf %20, %22 : vector<16x16xf32>
    %cst_17 = arith.constant 0.000000e+00 : f32
    %24 = vector.broadcast %cst_17 : f32 to vector<16x16xf32>
    %25 = arith.maximumf %23, %24 : vector<16x16xf32>
    %c0_18 = arith.constant 0 : index
    %c0_19 = arith.constant 0 : index
    %26 = vector.load %arg8[%c0_18, %c0_19] : memref<8x16xbf16, #tpu.memory_space<vmem>>, vector<8x16xbf16>
    %27 = arith.truncf %25 : vector<16x16xf32> to vector<16x16xbf16>
    %cst_20 = arith.constant dense<0.000000e+00> : vector<8x16xf32>
    %28 = tpu.matmul %26, %27, %cst_20 {dimension_numbers = #tpu.dot_dimension_numbers<[1], [0], [0], [1], [0, 0, 1, 1], [], []>} : vector<8x16xbf16>, vector<16x16xbf16>, vector<8x16xf32> -> vector<8x16xf32>
    %c0_21 = arith.constant 0 : index
    %c0_22 = arith.constant 0 : index
    %29 = vector.load %arg9[%c0_21, %c0_22] : memref<8x1xf32, #tpu.memory_space<vmem>>, vector<8x1xf32>
    %30 = vector.broadcast %29 : vector<8x1xf32> to vector<8x16xf32>
    %31 = arith.addf %28, %30 : vector<8x16xf32>
    %cst_23 = arith.constant 0.000000e+00 : f32
    %32 = vector.broadcast %cst_23 : f32 to vector<8x16xf32>
    %33 = arith.maximumf %31, %32 : vector<8x16xf32>
    %c0_24 = arith.constant 0 : index
    %c0_25 = arith.constant 0 : index
    %34 = vector.load %arg10[%c0_24, %c0_25] : memref<16x8xbf16, #tpu.memory_space<vmem>>, vector<16x8xbf16>
    %35 = arith.truncf %33 : vector<8x16xf32> to vector<8x16xbf16>
    %cst_26 = arith.constant dense<0.000000e+00> : vector<16x16xf32>
    %36 = tpu.matmul %34, %35, %cst_26 {dimension_numbers = #tpu.dot_dimension_numbers<[1], [0], [0], [1], [0, 0, 1, 1], [], []>} : vector<16x8xbf16>, vector<8x16xbf16>, vector<16x16xf32> -> vector<16x16xf32>
    %37 = arith.addf %25, %36 : vector<16x16xf32>
    %c0_27 = arith.constant 0 : index
    %c0_28 = arith.constant 0 : index
    %38 = vector.load %arg11[%c0_27, %c0_28] : memref<16x1xf32, #tpu.memory_space<vmem>>, vector<16x1xf32>
    %39 = vector.broadcast %38 : vector<16x1xf32> to vector<16x16xf32>
    %40 = arith.addf %37, %39 : vector<16x16xf32>
    %cst_29 = arith.constant 0.000000e+00 : f32
    %41 = vector.broadcast %cst_29 : f32 to vector<16x16xf32>
    %42 = arith.maximumf %40, %41 : vector<16x16xf32>
    %c0_30 = arith.constant 0 : index
    %c0_31 = arith.constant 0 : index
    %43 = vector.load %arg12[%c0_30, %c0_31] : memref<16x1xf32, #tpu.memory_space<vmem>>, vector<16x1xf32>
    %44 = vector.broadcast %43 : vector<16x1xf32> to vector<16x16xf32>
    %45 = arith.mulf %42, %44 : vector<16x16xf32>
    %cst_32 = arith.constant dense<0.000000e+00> : vector<16xf32>
    %46 = vector.multi_reduction <add>, %45, %cst_32 [0] : vector<16x16xf32> to vector<16xf32>
    %47 = vector.shape_cast %46 : vector<16xf32> to vector<1x16xf32>
    %c0_33 = arith.constant 0 : index
    %c0_34 = arith.constant 0 : index
    %48 = vector.load %arg13[%c0_33, %c0_34] : memref<1x1xf32, #tpu.memory_space<vmem>>, vector<1x1xf32>
    %49 = vector.broadcast %48 : vector<1x1xf32> to vector<1x16xf32>
    %50 = arith.addf %47, %49 : vector<1x16xf32>
    %c0_35 = arith.constant 0 : index
    %c0_36 = arith.constant 0 : index
    %51 = vector.load %arg14[%c0_35, %c0_36] : memref<1x16xf32, #tpu.memory_space<vmem>>, vector<1x16xf32>
    tpu.vector_store %arg14[%c0_35, %c0_36], %50 {strides = array<i32>} : memref<1x16xf32, #tpu.memory_space<vmem>>, vector<1x16xf32>,
    return
  }
  func.func @transform_0(%arg0: i32) -> (i32, i32) {
    %c0_i32 = arith.constant 0 : i32
    %c0_i32_0 = arith.constant 0 : i32
    return %arg0, %c0_i32 : i32, i32
  }
  func.func @transform_1(%arg0: i32) -> (i32, i32) {
    %c0_i32 = arith.constant 0 : i32
    %c0_i32_0 = arith.constant 0 : i32
    %c0_i32_1 = arith.constant 0 : i32
    return %c0_i32, %c0_i32_0 : i32, i32
  }
  func.func @transform_2(%arg0: i32) -> (i32, i32) {
    %c0_i32 = arith.constant 0 : i32
    %c0_i32_0 = arith.constant 0 : i32
    %c0_i32_1 = arith.constant 0 : i32
    return %c0_i32, %c0_i32_0 : i32, i32
  }
  func.func @transform_3(%arg0: i32) -> (i32, i32) {
    %c0_i32 = arith.constant 0 : i32
    %c0_i32_0 = arith.constant 0 : i32
    %c0_i32_1 = arith.constant 0 : i32
    return %c0_i32, %c0_i32_0 : i32, i32
  }
  func.func @transform_4(%arg0: i32) -> (i32, i32) {
    %c0_i32 = arith.constant 0 : i32
    %c0_i32_0 = arith.constant 0 : i32
    %c0_i32_1 = arith.constant 0 : i32
    return %c0_i32, %c0_i32_0 : i32, i32
  }
  func.func @transform_5(%arg0: i32) -> (i32, i32) {
    %c0_i32 = arith.constant 0 : i32
    %c0_i32_0 = arith.constant 0 : i32
    %c0_i32_1 = arith.constant 0 : i32
    return %c0_i32, %c0_i32_0 : i32, i32
  }
  func.func @transform_6(%arg0: i32) -> (i32, i32) {
    %c0_i32 = arith.constant 0 : i32
    %c0_i32_0 = arith.constant 0 : i32
    %c0_i32_1 = arith.constant 0 : i32
    return %c0_i32, %c0_i32_0 : i32, i32
  }
  func.func @transform_7(%arg0: i32) -> (i32, i32) {
    %c0_i32 = arith.constant 0 : i32
    %c0_i32_0 = arith.constant 0 : i32
    %c0_i32_1 = arith.constant 0 : i32
    return %c0_i32, %c0_i32_0 : i32, i32
  }
  func.func @transform_8(%arg0: i32) -> (i32, i32) {
    %c0_i32 = arith.constant 0 : i32
    %c0_i32_0 = arith.constant 0 : i32
    %c0_i32_1 = arith.constant 0 : i32
    return %c0_i32, %c0_i32_0 : i32, i32
  }
  func.func @transform_9(%arg0: i32) -> (i32, i32) {
    %c0_i32 = arith.constant 0 : i32
    %c0_i32_0 = arith.constant 0 : i32
    %c0_i32_1 = arith.constant 0 : i32
    return %c0_i32, %c0_i32_0 : i32, i32
  }
  func.func @transform_10(%arg0: i32) -> (i32, i32) {
    %c0_i32 = arith.constant 0 : i32
    %c0_i32_0 = arith.constant 0 : i32
    %c0_i32_1 = arith.constant 0 : i32
    return %c0_i32, %c0_i32_0 : i32, i32
  }
  func.func @transform_11(%arg0: i32) -> (i32, i32) {
    %c0_i32 = arith.constant 0 : i32
    %c0_i32_0 = arith.constant 0 : i32
    %c0_i32_1 = arith.constant 0 : i32
    return %c0_i32, %c0_i32_0 : i32, i32
  }
  func.func @transform_12(%arg0: i32) -> (i32, i32) {
    %c0_i32 = arith.constant 0 : i32
    %c0_i32_0 = arith.constant 0 : i32
    %c0_i32_1 = arith.constant 0 : i32
    return %c0_i32, %c0_i32_0 : i32, i32
  }
  func.func @transform_13(%arg0: i32) -> (i32, i32) {
    %c0_i32 = arith.constant 0 : i32
    %c0_i32_0 = arith.constant 0 : i32
    return %c0_i32, %arg0 : i32, i32
  }
}

module attributes {stable_mosaic.version = 11 : i64} {
  func.func @_mlp_kernel(%arg0: i32, %arg1: memref<16x32xf32, #tpu.memory_space<vmem>>, %arg2: memref<16x32xbf16, #tpu.memory_space<vmem>>, %arg3: memref<16x1xf32, #tpu.memory_space<vmem>>, %arg4: memref<8x16xbf16, #tpu.memory_space<vmem>>, %arg5: memref<8x1xf32, #tpu.memory_space<vmem>>, %arg6: memref<16x8xbf16, #tpu.memory_space<vmem>>, %arg7: memref<16x1xf32, #tpu.memory_space<vmem>>, %arg8: memref<8x16xbf16, #tpu.memory_space<vmem>>, %arg9: memref<8x1xf32, #tpu.memory_space<vmem>>, %arg10: memref<16x8xbf16, #tpu.memory_space<vmem>>, %arg11: memref<16x1xf32, #tpu.memory_space<vmem>>, %arg12: memref<16x1xf32, #tpu.memory_space<vmem>>, %arg13: memref<1x1xf32, #tpu.memory_space<vmem>>, %arg14: memref<1x16xf32, #tpu.memory_space<vmem>>) attributes {dimension_semantics = [#tpu.dimension_semantics<parallel>], iteration_bounds = array<i64: 1>, scalar_prefetch = 0 : i64, scratch_operands = 0 : i64, tpu.core_type = #tpu.core_type<tc>, window_params = [{transform_indices = @transform_0, window_bounds = array<i64: 16, 32>}, {pipeline_mode = #tpu.pipeline_mode<synchronous>, transform_indices = @transform_1, window_bounds = array<i64: 16, 32>}, {pipeline_mode = #tpu.pipeline_mode<synchronous>, transform_indices = @transform_2, window_bounds = array<i64: 16, 1>}, {pipeline_mode = #tpu.pipeline_mode<synchronous>, transform_indices = @transform_3, window_bounds = array<i64: 8, 16>}, {pipeline_mode = #tpu.pipeline_mode<synchronous>, transform_indices = @transform_4, window_bounds = array<i64: 8, 1>}, {pipeline_mode = #tpu.pipeline_mode<synchronous>, transform_indices = @transform_5, window_bounds = array<i64: 16, 8>}, {pipeline_mode = #tpu.pipeline_mode<synchronous>, transform_indices = @transform_6, window_bounds = array<i64: 16, 1>}, {pipeline_mode = #tpu.pipeline_mode<synchronous>, transform_indices = @transform_7, window_bounds = array<i64: 8, 16>}, {pipeline_mode = #tpu.pipeline_mode<synchronous>, transform_indices = @transform_8, window_bounds = array<i64: 8, 1>}, {pipeline_mode = #tpu.pipeline_mode<synchronous>, transform_indices = @transform_9, window_bounds = array<i64: 16, 8>}, {pipeline_mode = #tpu.pipeline_mode<synchronous>, transform_indices = @transform_10, window_bounds = array<i64: 16, 1>}, {pipeline_mode = #tpu.pipeline_mode<synchronous>, transform_indices = @transform_11, window_bounds = array<i64: 16, 1>}, {pipeline_mode = #tpu.pipeline_mode<synchronous>, transform_indices = @transform_12, window_bounds = array<i64: 1, 1>}, {transform_indices = @transform_13, window_bounds = array<i64: 1, 16>}]} {
    %c0 = arith.constant 0 : index
    %c0_0 = arith.constant 0 : index
    %0 = vector.load %arg1[%c0, %c0_0] : memref<16x32xf32, #tpu.memory_space<vmem>>, vector<16x32xf32>
    %1 = arith.truncf %0 : vector<16x32xf32> to vector<16x32xbf16>
    %c0_1 = arith.constant 0 : index
    %c0_2 = arith.constant 0 : index
    %2 = vector.load %arg2[%c0_1, %c0_2] : memref<16x32xbf16, #tpu.memory_space<vmem>>, vector<16x32xbf16>
    %cst = arith.constant dense<0.000000e+00> : vector<16x16xf32>
    %3 = tpu.matmul %2, %1, %cst {dimension_numbers = #tpu.dot_dimension_numbers<[1], [1], [0], [0], [0, 0, 1, 0], [], []>} : vector<16x32xbf16>, vector<16x32xbf16>, vector<16x16xf32> -> vector<16x16xf32>
    %c0_3 = arith.constant 0 : index
    %c0_4 = arith.constant 0 : index
    %4 = vector.load %arg3[%c0_3, %c0_4] : memref<16x1xf32, #tpu.memory_space<vmem>>, vector<16x1xf32>
    %5 = vector.broadcast %4 : vector<16x1xf32> to vector<16x16xf32>
    %6 = arith.addf %3, %5 : vector<16x16xf32>
    %cst_5 = arith.constant 0.000000e+00 : f32
    %7 = vector.broadcast %cst_5 : f32 to vector<16x16xf32>
    %8 = arith.maximumf %6, %7 : vector<16x16xf32>
    %c0_6 = arith.constant 0 : index
    %c0_7 = arith.constant 0 : index
    %9 = vector.load %arg4[%c0_6, %c0_7] : memref<8x16xbf16, #tpu.memory_space<vmem>>, vector<8x16xbf16>
    %10 = arith.truncf %8 : vector<16x16xf32> to vector<16x16xbf16>
    %cst_8 = arith.constant dense<0.000000e+00> : vector<8x16xf32>
    %11 = tpu.matmul %9, %10, %cst_8 {dimension_numbers = #tpu.dot_dimension_numbers<[1], [0], [0], [1], [0, 0, 1, 1], [], []>} : vector<8x16xbf16>, vector<16x16xbf16>, vector<8x16xf32> -> vector<8x16xf32>
    %c0_9 = arith.constant 0 : index
    %c0_10 = arith.constant 0 : index
    %12 = vector.load %arg5[%c0_9, %c0_10] : memref<8x1xf32, #tpu.memory_space<vmem>>, vector<8x1xf32>
    %13 = vector.broadcast %12 : vector<8x1xf32> to vector<8x16xf32>
    %14 = arith.addf %11, %13 : vector<8x16xf32>
    %cst_11 = arith.constant 0.000000e+00 : f32
    %15 = vector.broadcast %cst_11 : f32 to vector<8x16xf32>
    %16 = arith.maximumf %14, %15 : vector<8x16xf32>
    %c0_12 = arith.constant 0 : index
    %c0_13 = arith.constant 0 : index
    %17 = vector.load %arg6[%c0_12, %c0_13] : memref<16x8xbf16, #tpu.memory_space<vmem>>, vector<16x8xbf16>
    %18 = arith.truncf %16 : vector<8x16xf32> to vector<8x16xbf16>
    %cst_14 = arith.constant dense<0.000000e+00> : vector<16x16xf32>
    %19 = tpu.matmul %17, %18, %cst_14 {dimension_numbers = #tpu.dot_dimension_numbers<[1], [0], [0], [1], [0, 0, 1, 1], [], []>} : vector<16x8xbf16>, vector<8x16xbf16>, vector<16x16xf32> -> vector<16x16xf32>
    %20 = arith.addf %8, %19 : vector<16x16xf32>
    %c0_15 = arith.constant 0 : index
    %c0_16 = arith.constant 0 : index
    %21 = vector.load %arg7[%c0_15, %c0_16] : memref<16x1xf32, #tpu.memory_space<vmem>>, vector<16x1xf32>
    %22 = vector.broadcast %21 : vector<16x1xf32> to vector<16x16xf32>
    %23 = arith.addf %20, %22 : vector<16x16xf32>
    %cst_17 = arith.constant 0.000000e+00 : f32
    %24 = vector.broadcast %cst_17 : f32 to vector<16x16xf32>
    %25 = arith.maximumf %23, %24 : vector<16x16xf32>
    %c0_18 = arith.constant 0 : index
    %c0_19 = arith.constant 0 : index
    %26 = vector.load %arg8[%c0_18, %c0_19] : memref<8x16xbf16, #tpu.memory_space<vmem>>, vector<8x16xbf16>
    %27 = arith.truncf %25 : vector<16x16xf32> to vector<16x16xbf16>
    %cst_20 = arith.constant dense<0.000000e+00> : vector<8x16xf32>
    %28 = tpu.matmul %26, %27, %cst_20 {dimension_numbers = #tpu.dot_dimension_numbers<[1], [0], [0], [1], [0, 0, 1, 1], [], []>} : vector<8x16xbf16>, vector<16x16xbf16>, vector<8x16xf32> -> vector<8x16xf32>
    %c0_21 = arith.constant 0 : index
    %c0_22 = arith.constant 0 : index
    %29 = vector.load %arg9[%c0_21, %c0_22] : memref<8x1xf32, #tpu.memory_space<vmem>>, vector<8x1xf32>
    %30 = vector.broadcast %29 : vector<8x1xf32> to vector<8x16xf32>
    %31 = arith.addf %28, %30 : vector<8x16xf32>
    %cst_23 = arith.constant 0.000000e+00 : f32
    %32 = vector.broadcast %cst_23 : f32 to vector<8x16xf32>
    %33 = arith.maximumf %31, %32 : vector<8x16xf32>
    %c0_24 = arith.constant 0 : index
    %c0_25 = arith.constant 0 : index
    %34 = vector.load %arg10[%c0_24, %c0_25] : memref<16x8xbf16, #tpu.memory_space<vmem>>, vector<16x8xbf16>
    %35 = arith.truncf %33 : vector<8x16xf32> to vector<8x16xbf16>
    %cst_26 = arith.constant dense<0.000000e+00> : vector<16x16xf32>
    %36 = tpu.matmul %34, %35, %cst_26 {dimension_numbers = #tpu.dot_dimension_numbers<[1], [0], [0], [1], [0, 0, 1, 1], [], []>} : vector<16x8xbf16>, vector<8x16xbf16>, vector<16x16xf32> -> vector<16x16xf32>
    %37 = arith.addf %25, %36 : vector<16x16xf32>
    %c0_27 = arith.constant 0 : index
    %c0_28 = arith.constant 0 : index
    %38 = vector.load %arg11[%c0_27, %c0_28] : memref<16x1xf32, #tpu.memory_space<vmem>>, vector<16x1xf32>
    %39 = vector.broadcast %38 : vector<16x1xf32> to vector<16x16xf32>
    %40 = arith.addf %37, %39 : vector<16x16xf32>
    %cst_29 = arith.constant 0.000000e+00 : f32
    %41 = vector.broadcast %cst_29 : f32 to vector<16x16xf32>
    %42 = arith.maximumf %40, %41 : vector<16x16xf32>
    %c0_30 = arith.constant 0 : index
    %c0_31 = arith.constant 0 : index
    %43 = vector.load %arg12[%c0_30, %c0_31] : memref<16x1xf32, #tpu.memory_space<vmem>>, vector<16x1xf32>
    %44 = vector.broadcast %43 : vector<16x1xf32> to vector<16x16xf32>
    %45 = arith.mulf %42, %44 : vector<16x16xf32>
    %cst_32 = arith.constant dense<0.000000e+00> : vector<16xf32>
    %46 = vector.multi_reduction <add>, %45, %cst_32 [0] : vector<16x16xf32> to vector<16xf32>
    %47 = vector.shape_cast %46 : vector<16xf32> to vector<1x16xf32>
    %c0_33 = arith.constant 0 : index
    %c0_34 = arith.constant 0 : index
    %48 = vector.load %arg13[%c0_33, %c0_34] : memref<1x1xf32, #tpu.memory_space<vmem>>, vector<1x1xf32>
    %49 = vector.broadcast %48 : vector<1x1xf32> to vector<1x16xf32>
    %50 = arith.addf %47, %49 : vector<1x16xf32>
    %c0_35 = arith.constant 0 : index
    %c0_36 = arith.constant 0 : index
    %51 = vector.load %arg14[%c0_35, %c0_36] : memref<1x16xf32, #tpu.memory_space<vmem>>, vector<1x16xf32>
    tpu.vector_store %arg14[%c0_35, %c0_36], %50 {strides = array<i32>} : memref<1x16xf32, #tpu.memory_space<vmem>>, vector<1x16xf32>,
    return
  }
  func.func @transform_0(%arg0: i32) -> (i32, i32) {
    %c0_i32 = arith.constant 0 : i32
    %c0_i32_0 = arith.constant 0 : i32
    return %arg0, %c0_i32 : i32, i32
  }
  func.func @transform_1(%arg0: i32) -> (i32, i32) {
    %c0_i32 = arith.constant 0 : i32
    %c0_i32_0 = arith.constant 0 : i32
    %c0_i32_1 = arith.constant 0 : i32
    return %c0_i32, %c0_i32_0 : i32, i32
  }
  func.func @transform_2(%arg0: i32) -> (i32, i32) {
    %c0_i32 = arith.constant 0 : i32
    %c0_i32_0 = arith.constant 0 : i32
    %c0_i32_1 = arith.constant 0 : i32
    return %c0_i32, %c0_i32_0 : i32, i32
  }
  func.func @transform_3(%arg0: i32) -> (i32, i32) {
    %c0_i32 = arith.constant 0 : i32
    %c0_i32_0 = arith.constant 0 : i32
    %c0_i32_1 = arith.constant 0 : i32
    return %c0_i32, %c0_i32_0 : i32, i32
  }
  func.func @transform_4(%arg0: i32) -> (i32, i32) {
    %c0_i32 = arith.constant 0 : i32
    %c0_i32_0 = arith.constant 0 : i32
    %c0_i32_1 = arith.constant 0 : i32
    return %c0_i32, %c0_i32_0 : i32, i32
  }
  func.func @transform_5(%arg0: i32) -> (i32, i32) {
    %c0_i32 = arith.constant 0 : i32
    %c0_i32_0 = arith.constant 0 : i32
    %c0_i32_1 = arith.constant 0 : i32
    return %c0_i32, %c0_i32_0 : i32, i32
  }
  func.func @transform_6(%arg0: i32) -> (i32, i32) {
    %c0_i32 = arith.constant 0 : i32
    %c0_i32_0 = arith.constant 0 : i32
    %c0_i32_1 = arith.constant 0 : i32
    return %c0_i32, %c0_i32_0 : i32, i32
  }
  func.func @transform_7(%arg0: i32) -> (i32, i32) {
    %c0_i32 = arith.constant 0 : i32
    %c0_i32_0 = arith.constant 0 : i32
    %c0_i32_1 = arith.constant 0 : i32
    return %c0_i32, %c0_i32_0 : i32, i32
  }
  func.func @transform_8(%arg0: i32) -> (i32, i32) {
    %c0_i32 = arith.constant 0 : i32
    %c0_i32_0 = arith.constant 0 : i32
    %c0_i32_1 = arith.constant 0 : i32
    return %c0_i32, %c0_i32_0 : i32, i32
  }
  func.func @transform_9(%arg0: i32) -> (i32, i32) {
    %c0_i32 = arith.constant 0 : i32
    %c0_i32_0 = arith.constant 0 : i32
    %c0_i32_1 = arith.constant 0 : i32
    return %c0_i32, %c0_i32_0 : i32, i32
  }
  func.func @transform_10(%arg0: i32) -> (i32, i32) {
    %c0_i32 = arith.constant 0 : i32
    %c0_i32_0 = arith.constant 0 : i32
    %c0_i32_1 = arith.constant 0 : i32
    return %c0_i32, %c0_i32_0 : i32, i32
  }
  func.func @transform_11(%arg0: i32) -> (i32, i32) {
    %c0_i32 = arith.constant 0 : i32
    %c0_i32_0 = arith.constant 0 : i32
    %c0_i32_1 = arith.constant 0 : i32
    return %c0_i32, %c0_i32_0 : i32, i32
  }
  func.func @transform_12(%arg0: i32) -> (i32, i32) {
    %c0_i32 = arith.constant 0 : i32
    %c0_i32_0 = arith.constant 0 : i32
    %c0_i32_1 = arith.constant 0 : i32
    return %c0_i32, %c0_i32_0 : i32, i32
  }
  func.func @transform_13(%arg0: i32) -> (i32, i32) {
    %c0_i32 = arith.constant 0 : i32
    %c0_i32_0 = arith.constant 0 : i32
    return %c0_i32, %arg0 : i32, i32
  }
}

</mosaic_0001>

<llo_original>
// kernel: squeeze.1
$region0: #{squeeze.1}
  %s0 = inlined_call_operand.vmem [shape: f32[16], index: 0, kind: input, shape index: {}]
  %s1 = inlined_call_operand.hbm [shape: f32[2,8], index: 1, kind: output, shape index: {}]
  $region1: #{squeeze.1} parent=0
    #allocation0 [shape = 'u8[1024]{0}', space=vmem, size = 0x400, scoped, tag = 'operand span for operand 1']
    #allocation1 [shape = 's32[1]{0}', space=sflag, size = 0x4, scoped, tag = 'scoped memory for squeeze.1']
    #allocation2 [shape = 'u8[4096]{0}', space=vmem, size = 0x1000, scoped, tag = 'scoped mem for output reshape']
    #allocation3 [shape = 'u8[4096]{0}', space=vmem, size = 0x1000, scoped, tag = 'scoped mem for input reshape']
    %2 = vsyncpa [#allocation1], 0
    %s4 = ssub.s32 2, 1
    %v5 = vld [vmem:[%s0] sm:%s4]
    %6 = vst [vmem:[#allocation3] sm:%s4] %v5
    %v7 = vld [vmem:[#allocation3] sm:$0x1]
    %vm8 = vcmask 64512
    %9 = vst.msk [vmem:[#allocation2] sm:$0x1] %vm8, %v7
    %v10 = vld [vmem:[#allocation3] sm:$0x1]
    %11 = vrot.lane.b32.xlu0 %v10, 120
    %v12 = vpop.permute.xlu0 %11
    %vm13 = vcmask 64512
    %s14 = scalar_lea.vmem [#allocation2], 1
    %15 = vst.msk [vmem:[%s14] sm:$0x1] %vm13, %v12
    %s17 = ssub.s32 4, 1
    %v18 = vld [vmem:[#allocation2] sm:%s17]
    %s20 = ssub.s32 4, 1
    %21 = vst [vmem:[#allocation0] sm:%s20] %v18
    %23 = vsyncadd [#allocation1], 0
    %s25 = sshll.u32 [#allocation0], 4
    %s26 = int_to_ptr.vmem [resolvable:$true] %s25
    %s27 = sshll.u32 %s1, 4
    %s28 = int_to_ptr.hbm [resolvable:$true] %s27
    %30 = dma.vmem_to_hbm [thread:$0]  %s26, 32, %s28, [#allocation1]
    %32 = dma.done [#allocation1], 32
    %33 = vsyncpa [#allocation1], 1

// kernel: _forward_impl.1
$region0: #{_forward_impl.1}
  #allocation0 [shape = 'u32[]', space=smem, size = 0x4, offset = 0x4, fixed_abs, tag = 'smem constant byte address 0x4 - core index']
  #allocation1 [shape = 'u32[72,128]{1,0:T(1,128)}', space=vmem, size = 0x9000, scoped, tag = 'internal scratch']
  #allocation2 [shape = 'f32[1,1]{1,0:T(1,128)S(1)}', space=vmem, size = 0x200, scoped, tag = 'scoped memory for _forward_impl.1']
  %s0 = inlined_call_operand.vmem [shape: f32[16,32], index: 0, kind: input, shape index: {}]
  %s1 = inlined_call_operand.vmem [shape: bf16[16,32], index: 1, kind: input, shape index: {}]
  %s2 = inlined_call_operand.vmem [shape: f32[16,1], index: 2, kind: input, shape index: {}]
  %s3 = inlined_call_operand.vmem [shape: bf16[8,16], index: 3, kind: input, shape index: {}]
  %s4 = inlined_call_operand.vmem [shape: f32[8,1], index: 4, kind: input, shape index: {}]
  %s5 = inlined_call_operand.vmem [shape: bf16[16,8], index: 5, kind: input, shape index: {}]
  %s6 = inlined_call_operand.vmem [shape: f32[16,1], index: 6, kind: input, shape index: {}]
  %s7 = inlined_call_operand.vmem [shape: bf16[8,16], index: 7, kind: input, shape index: {}]
  %s8 = inlined_call_operand.vmem [shape: f32[8,1], index: 8, kind: input, shape index: {}]
  %s9 = inlined_call_operand.vmem [shape: bf16[16,8], index: 9, kind: input, shape index: {}]
  %s10 = inlined_call_operand.vmem [shape: f32[16,1], index: 10, kind: input, shape index: {}]
  %s11 = inlined_call_operand.vmem [shape: f32[16,1], index: 11, kind: input, shape index: {}]
  %s12 = inlined_call_operand.<no memory space> [shape: f32[1,1], index: 12, kind: input, shape index: {}]
  %s13 = inlined_call_operand.vmem [shape: f32[1,16], index: 13, kind: output, shape index: {}]
  %s14 = sld [smem:[#allocation0]]
  $region62: #{_forward_impl.1} parent=0
    _
  %s16 = ssub.s32 1, %s14
  %s17 = scalar_select 0, %s16, %s14
  %v18 = vstv %s12
  %19 = vst [vmem:[#allocation2] sm:$0x1] %v18
  // Predicated region
  $region2: #{_forward_impl.1} parent=0 // pred_check
    _
  $region3: #{_forward_impl.1} parent=0 // pred_check_branch
    %21 = sbr.rel (0) target = $region5
  $region4: #{_forward_impl.1} parent=0 // pred_region
    _
  $region5: #{_forward_impl.1} parent=0 // pred_fallthru
    _
  // Predicated region
  $region6: #{_forward_impl.1} parent=0 // pred_check
    _
  $region7: #{_forward_impl.1} parent=0 // pred_check_branch
    %23 = sbr.rel (0) target = $region9
  $region8: #{_forward_impl.1} parent=0 // pred_region
    _
  $region9: #{_forward_impl.1} parent=0 // pred_fallthru
    _
  // Predicated region
  $region10: #{_forward_impl.1} parent=0 // pred_check
    _
  $region11: #{_forward_impl.1} parent=0 // pred_check_branch
    %25 = sbr.rel (0) target = $region13
  $region12: #{_forward_impl.1} parent=0 // pred_region
    _
  $region13: #{_forward_impl.1} parent=0 // pred_fallthru
    _
  // Predicated region
  $region14: #{_forward_impl.1} parent=0 // pred_check
    _
  $region15: #{_forward_impl.1} parent=0 // pred_check_branch
    %27 = sbr.rel (0) target = $region17
  $region16: #{_forward_impl.1} parent=0 // pred_region
    _
  $region17: #{_forward_impl.1} parent=0 // pred_fallthru
    _
  // Predicated region
  $region18: #{_forward_impl.1} parent=0 // pred_check
    _
  $region19: #{_forward_impl.1} parent=0 // pred_check_branch
    %29 = sbr.rel (0) target = $region21
  $region20: #{_forward_impl.1} parent=0 // pred_region
    _
  $region21: #{_forward_impl.1} parent=0 // pred_fallthru
    _
  // Predicated region
  $region22: #{_forward_impl.1} parent=0 // pred_check
    _
  $region23: #{_forward_impl.1} parent=0 // pred_check_branch
    %31 = sbr.rel (0) target = $region25
  $region24: #{_forward_impl.1} parent=0 // pred_region
    _
  $region25: #{_forward_impl.1} parent=0 // pred_fallthru
    _
  // Predicated region
  $region26: #{_forward_impl.1} parent=0 // pred_check
    _
  $region27: #{_forward_impl.1} parent=0 // pred_check_branch
    %33 = sbr.rel (0) target = $region29
  $region28: #{_forward_impl.1} parent=0 // pred_region
    _
  $region29: #{_forward_impl.1} parent=0 // pred_fallthru
    _
  // Predicated region
  $region30: #{_forward_impl.1} parent=0 // pred_check
    _
  $region31: #{_forward_impl.1} parent=0 // pred_check_branch
    %35 = sbr.rel (0) target = $region33
  $region32: #{_forward_impl.1} parent=0 // pred_region
    _
  $region33: #{_forward_impl.1} parent=0 // pred_fallthru
    _
  // Predicated region
  $region34: #{_forward_impl.1} parent=0 // pred_check
    _
  $region35: #{_forward_impl.1} parent=0 // pred_check_branch
    %37 = sbr.rel (0) target = $region37
  $region36: #{_forward_impl.1} parent=0 // pred_region
    _
  $region37: #{_forward_impl.1} parent=0 // pred_fallthru
    _
  // Predicated region
  $region38: #{_forward_impl.1} parent=0 // pred_check
    _
  $region39: #{_forward_impl.1} parent=0 // pred_check_branch
    %39 = sbr.rel (0) target = $region41
  $region40: #{_forward_impl.1} parent=0 // pred_region
    _
  $region41: #{_forward_impl.1} parent=0 // pred_fallthru
    _
  // Predicated region
  $region42: #{_forward_impl.1} parent=0 // pred_check
    _
  $region43: #{_forward_impl.1} parent=0 // pred_check_branch
    %41 = sbr.rel (0) target = $region45
  $region44: #{_forward_impl.1} parent=0 // pred_region
    _
  $region45: #{_forward_impl.1} parent=0 // pred_fallthru
    _
  // Predicated region
  $region46: #{_forward_impl.1} parent=0 // pred_check
    _
  $region47: #{_forward_impl.1} parent=0 // pred_check_branch
    %43 = sbr.rel (0) target = $region49
  $region48: #{_forward_impl.1} parent=0 // pred_region
    _
  $region49: #{_forward_impl.1} parent=0 // pred_fallthru
    _
  // Predicated region
  $region50: #{_forward_impl.1} parent=0 // pred_check
    _
  $region51: #{_forward_impl.1} parent=0 // pred_check_branch
    %45 = sbr.rel (0) target = $region53
  $region52: #{_forward_impl.1} parent=0 // pred_region
    _
  $region53: #{_forward_impl.1} parent=0 // pred_fallthru
    _
  %v47 = vld [vmem:[%s0] sm:$0xff]
  %v48 = vld [vmem:[%s0 + $0x8] sm:$0xff]
  %v49 = vpack.c.bf16 %v48, %v47
  %v50 = vld [vmem:[%s1] sm:$0xf]
  %v51 = vld [vmem:[%s1 + $0x4] sm:$0xf]
  %v52 = vld [vmem:[%s2] sm:$0xff]
  %v53 = vld [vmem:[%s2 + $0x8] sm:$0xff]
  %55 = vset.pattern.permute.xlu0 0
  %56 = vperm.xlu0 %55, %v52
  %v57 = vpop.permute.xlu0 %56
  %60 = vset.pattern.permute.xlu0 0
  %61 = vperm.xlu0 %60, %v53
  %v62 = vpop.permute.xlu0 %61
  %v66 = vunpack.c.l.b16 %v50
  %v67 = vunpack.c.l.b16 %v51
  %v68 = vpack.c.b16 %v67, %v66
  %vm69 = vcmask 261120
  %v71 = vsel %vm69, %v68, 0
  %v74 = vsel %vm69, %v49, 0
  %76 = vmatpush.bf16.xpose.msra.mxu0 0
  %77 = vmatpush.bf16.xpose.msra.mxu0 0
  %78 = vmatpush.bf16.xpose.msra.mxu0 0
  %79 = vmatpush.bf16.xpose.msra.mxu0 0
  %80 = vmatpush.bf16.xpose.msra.mxu0 0
  %81 = vmatpush.bf16.xpose.msra.mxu0 0
  %82 = vmatpush.bf16.xpose.msra.mxu0 0
  %83 = vmatpush.bf16.xpose.msra.mxu0 %v74
  %84 = vmatmul.bf16.gmra.mxu0 %v71
  %v85 = vpop.f32.mrf.mxu0
  %v86 = vadd.f32 %v57, %v85
  %v87 = vpop.f32.mrf.mxu0
  %v88 = vadd.f32 %v62, %v87
  %89 = vdwg.mxu0
  %v90 = vmax.f32 %v86, 0.0
  %v91 = vmax.f32 %v88, 0.0
  %v92 = vld [vmem:[%s3] sm:$0xf]
  %v93 = vpack.c.bf16 %v91, %v90
  %v94 = vld [vmem:[%s4] sm:$0xff]
  %96 = vset.pattern.permute.xlu0 0
  %97 = vperm.xlu0 %96, %v94
  %v98 = vpop.permute.xlu0 %97
  %vm100 = vcmask 130048
  %v102 = vsel %vm100, %v92, 0
  %104 = vmatpush.bf16.msra.mxu0 0
  %105 = vmatpush.bf16.msra.mxu0 0
  %106 = vmatpush.bf16.msra.mxu0 0
  %107 = vmatpush.bf16.msra.mxu0 0
  %108 = vmatpush.bf16.msra.mxu0 0
  %109 = vmatpush.bf16.msra.mxu0 0
  %110 = vmatpush.bf16.msra.mxu0 0
  %111 = vmatpush.bf16.msra.mxu0 %v93
  %112 = vmatmul.bf16.gmra.mxu0 %v102
  %v113 = vpop.f32.mrf.mxu0
  %v114 = vadd.f32 %v98, %v113
  %v115 = vpop.f32.mrf.mxu0
  %116 = vdwg.mxu0
  %v117 = vmax.f32 %v114, 0.0
  %v118 = vld [vmem:[%s5] sm:$0xf]
  %v119 = vld [vmem:[%s5 + $0x4] sm:$0xf]
  %v120 = vpack.c.bf16 %v117, %v117
  %v123 = vunpack.c.l.b16 %v118
  %v124 = vunpack.c.l.b16 %v119
  %v125 = vpack.c.b16 %v124, %v123
  %vm126 = vcmask 64512
  %v128 = vsel %vm126, %v125, 0
  %vm130 = vcmask 1043456
  %v132 = vsel %vm130, %v120, 0
  %134 = vmatpush.bf16.msra.mxu0 0
  %135 = vmatpush.bf16.msra.mxu0 0
  %136 = vmatpush.bf16.msra.mxu0 0
  %137 = vmatpush.bf16.msra.mxu0 0
  %138 = vmatpush.bf16.msra.mxu0 0
  %139 = vmatpush.bf16.msra.mxu0 0
  %140 = vmatpush.bf16.msra.mxu0 0
  %141 = vmatpush.bf16.msra.mxu0 %v132
  %142 = vmatmul.bf16.gmra.mxu0 %v128
  %v143 = vpop.f32.mrf.mxu0
  %v144 = vadd.f32 0.0, %v143
  %v145 = vpop.f32.mrf.mxu0
  %v146 = vadd.f32 0.0, %v145
  %147 = vdwg.mxu0
  %v148 = vadd.f32 %v90, %v144
  %v149 = vadd.f32 %v91, %v146
  %v150 = vld [vmem:[%s6] sm:$0xff]
  %v151 = vld [vmem:[%s6 + $0x8] sm:$0xff]
  %153 = vset.pattern.permute.xlu0 0
  %154 = vperm.xlu0 %153, %v150
  %v155 = vpop.permute.xlu0 %154
  %158 = vset.pattern.permute.xlu0 0
  %159 = vperm.xlu0 %158, %v151
  %v160 = vpop.permute.xlu0 %159
  %v162 = vadd.f32 %v148, %v155
  %v163 = vadd.f32 %v149, %v160
  %v164 = vmax.f32 %v162, 0.0
  %v165 = vmax.f32 %v163, 0.0
  %v166 = vld [vmem:[%s7] sm:$0xf]
  %v167 = vpack.c.bf16 %v165, %v164
  %v168 = vld [vmem:[%s8] sm:$0xff]
  %170 = vset.pattern.permute.xlu0 0
  %171 = vperm.xlu0 %170, %v168
  %v172 = vpop.permute.xlu0 %171
  %v175 = vsel %vm100, %v166, 0
  %177 = vmatpush.bf16.msra.mxu0 0
  %178 = vmatpush.bf16.msra.mxu0 0
  %179 = vmatpush.bf16.msra.mxu0 0
  %180 = vmatpush.bf16.msra.mxu0 0
  %181 = vmatpush.bf16.msra.mxu0 0
  %182 = vmatpush.bf16.msra.mxu0 0
  %183 = vmatpush.bf16.msra.mxu0 0
  %184 = vmatpush.bf16.msra.mxu0 %v167
  %185 = vmatmul.bf16.gmra.mxu0 %v175
  %v186 = vpop.f32.mrf.mxu0
  %v187 = vadd.f32 %v172, %v186
  %v188 = vpop.f32.mrf.mxu0
  %189 = vdwg.mxu0
  %v190 = vmax.f32 %v187, 0.0
  %v191 = vld [vmem:[%s9] sm:$0xf]
  %v192 = vld [vmem:[%s9 + $0x4] sm:$0xf]
  %v193 = vpack.c.bf16 %v190, %v190
  %v196 = vunpack.c.l.b16 %v191
  %v197 = vunpack.c.l.b16 %v192
  %v198 = vpack.c.b16 %v197, %v196
  %v200 = vsel %vm126, %v198, 0
  %v203 = vsel %vm130, %v193, 0
  %205 = vmatpush.bf16.msra.mxu0 0
  %206 = vmatpush.bf16.msra.mxu0 0
  %207 = vmatpush.bf16.msra.mxu0 0
  %208 = vmatpush.bf16.msra.mxu0 0
  %209 = vmatpush.bf16.msra.mxu0 0
  %210 = vmatpush.bf16.msra.mxu0 0
  %211 = vmatpush.bf16.msra.mxu0 0
  %212 = vmatpush.bf16.msra.mxu0 %v203
  %213 = vmatmul.bf16.gmra.mxu0 %v200
  %v214 = vpop.f32.mrf.mxu0
  %v215 = vadd.f32 0.0, %v214
  %v216 = vpop.f32.mrf.mxu0
  %v217 = vadd.f32 0.0, %v216
  %218 = vdwg.mxu0
  %v219 = vadd.f32 %v164, %v215
  %v220 = vadd.f32 %v165, %v217
  %v221 = vld [vmem:[%s10] sm:$0xff]
  %v222 = vld [vmem:[%s10 + $0x8] sm:$0xff]
  %224 = vset.pattern.permute.xlu0 0
  %225 = vperm.xlu0 %224, %v221
  %v226 = vpop.permute.xlu0 %225
  %229 = vset.pattern.permute.xlu0 0
  %230 = vperm.xlu0 %229, %v222
  %v231 = vpop.permute.xlu0 %230
  %v233 = vadd.f32 %v219, %v226
  %v234 = vadd.f32 %v220, %v231
  %v235 = vmax.f32 %v233, 0.0
  %v236 = vmax.f32 %v234, 0.0
  %v237 = vld [vmem:[%s11] sm:$0xff]
  %v238 = vld [vmem:[%s11 + $0x8] sm:$0xff]
  %240 = vset.pattern.permute.xlu0 0
  %241 = vperm.xlu0 %240, %v237
  %v242 = vpop.permute.xlu0 %241
  %245 = vset.pattern.permute.xlu0 0
  %246 = vperm.xlu0 %245, %v238
  %v247 = vpop.permute.xlu0 %246
  %v249 = vmul.f32 %v235, %v242
  %v250 = vmul.f32 %v236, %v247
  %v251 = vsel %vm100, %v249, 0.0
  %v252 = vsel %vm100, %v250, 0.0
  %v253 = vadd.f32 %v251, %v252
  %v254 = vrot.slane %v253, 4
  %v255 = vadd.f32 %v253, %v254
  %v256 = vrot.slane %v255, 2
  %v257 = vadd.f32 %v255, %v256
  %v258 = vrot.slane %v257, 1
  %v259 = vadd.f32 %v257, %v258
  %v260 = vld [vmem:[#allocation2] sm:$0x1]
  %262 = vset.pattern.permute.xlu0 0
  %263 = vperm.xlu0 %262, %v260
  %v264 = vpop.permute.xlu0 %263
  %v266 = vperm.slane %v264, 0
  %v267 = vadd.f32 %v259, %v266
  %vm268 = vcmask 122880
  %269 = vst.msk [vmem:[%s13] sm:$0x1] %vm268, %v267
  // Predicated region
  $region54: #{_forward_impl.1} parent=0 // pred_check
    _
  $region55: #{_forward_impl.1} parent=0 // pred_check_branch
    %271 = sbr.rel (0) target = $region57
  $region56: #{_forward_impl.1} parent=0 // pred_region
    _
  $region57: #{_forward_impl.1} parent=0 // pred_fallthru
    _
  // Predicated region
  $region58: #{_forward_impl.1} parent=0 // pred_check
    _
  $region59: #{_forward_impl.1} parent=0 // pred_check_branch
    %273 = sbr.rel (0) target = $region61
  $region60: #{_forward_impl.1} parent=0 // pred_region
    _
  $region61: #{_forward_impl.1} parent=0 // pred_fallthru
    _

// kernel: squeeze.1
$region0: #{squeeze.1}
  %s0 = inlined_call_operand.vmem [shape: f32[16], index: 0, kind: input, shape index: {}]
  %s1 = inlined_call_operand.hbm [shape: f32[2,8], index: 1, kind: output, shape index: {}]
  $region1: #{squeeze.1} parent=0
    #allocation0 [shape = 'u8[1024]{0}', space=vmem, size = 0x400, scoped, tag = 'operand span for operand 1']
    #allocation1 [shape = 's32[1]{0}', space=sflag, size = 0x4, scoped, tag = 'scoped memory for squeeze.1']
    #allocation2 [shape = 'u8[4096]{0}', space=vmem, size = 0x1000, scoped, tag = 'scoped mem for output reshape']
    #allocation3 [shape = 'u8[4096]{0}', space=vmem, size = 0x1000, scoped, tag = 'scoped mem for input reshape']
    %2 = vsyncpa [#allocation1], 0
    %s4 = ssub.s32 2, 1
    %v5 = vld [vmem:[%s0] sm:%s4]
    %6 = vst [vmem:[#allocation3] sm:%s4] %v5
    %v7 = vld [vmem:[#allocation3] sm:$0x1]
    %vm8 = vcmask 64512
    %9 = vst.msk [vmem:[#allocation2] sm:$0x1] %vm8, %v7
    %v10 = vld [vmem:[#allocation3] sm:$0x1]
    %11 = vrot.lane.b32.xlu0 %v10, 120
    %v12 = vpop.permute.xlu0 %11
    %vm13 = vcmask 64512
    %s14 = scalar_lea.vmem [#allocation2], 1
    %15 = vst.msk [vmem:[%s14] sm:$0x1] %vm13, %v12
    %s17 = ssub.s32 4, 1
    %v18 = vld [vmem:[#allocation2] sm:%s17]
    %s20 = ssub.s32 4, 1
    %21 = vst [vmem:[#allocation0] sm:%s20] %v18
    %23 = vsyncadd [#allocation1], 0
    %s25 = sshll.u32 [#allocation0], 4
    %s26 = int_to_ptr.vmem [resolvable:$true] %s25
    %s27 = sshll.u32 %s1, 4
    %s28 = int_to_ptr.hbm [resolvable:$true] %s27
    %30 = dma.vmem_to_hbm [thread:$0]  %s26, 32, %s28, [#allocation1]
    %32 = dma.done [#allocation1], 32
    %33 = vsyncpa [#allocation1], 1

// kernel: _forward_impl.1
$region0: #{_forward_impl.1}
  #allocation0 [shape = 'u32[]', space=smem, size = 0x4, offset = 0x4, fixed_abs, tag = 'smem constant byte address 0x4 - core index']
  #allocation1 [shape = 'u32[72,128]{1,0:T(1,128)}', space=vmem, size = 0x9000, scoped, tag = 'internal scratch']
  #allocation2 [shape = 'f32[1,1]{1,0:T(1,128)S(1)}', space=vmem, size = 0x200, scoped, tag = 'scoped memory for _forward_impl.1']
  %s0 = inlined_call_operand.vmem [shape: f32[16,32], index: 0, kind: input, shape index: {}]
  %s1 = inlined_call_operand.vmem [shape: bf16[16,32], index: 1, kind: input, shape index: {}]
  %s2 = inlined_call_operand.vmem [shape: f32[16,1], index: 2, kind: input, shape index: {}]
  %s3 = inlined_call_operand.vmem [shape: bf16[8,16], index: 3, kind: input, shape index: {}]
  %s4 = inlined_call_operand.vmem [shape: f32[8,1], index: 4, kind: input, shape index: {}]
  %s5 = inlined_call_operand.vmem [shape: bf16[16,8], index: 5, kind: input, shape index: {}]
  %s6 = inlined_call_operand.vmem [shape: f32[16,1], index: 6, kind: input, shape index: {}]
  %s7 = inlined_call_operand.vmem [shape: bf16[8,16], index: 7, kind: input, shape index: {}]
  %s8 = inlined_call_operand.vmem [shape: f32[8,1], index: 8, kind: input, shape index: {}]
  %s9 = inlined_call_operand.vmem [shape: bf16[16,8], index: 9, kind: input, shape index: {}]
  %s10 = inlined_call_operand.vmem [shape: f32[16,1], index: 10, kind: input, shape index: {}]
  %s11 = inlined_call_operand.vmem [shape: f32[16,1], index: 11, kind: input, shape index: {}]
  %s12 = inlined_call_operand.<no memory space> [shape: f32[1,1], index: 12, kind: input, shape index: {}]
  %s13 = inlined_call_operand.vmem [shape: f32[1,16], index: 13, kind: output, shape index: {}]
  %s14 = sld [smem:[#allocation0]]
  $region62: #{_forward_impl.1} parent=0
    _
  %s16 = ssub.s32 1, %s14
  %s17 = scalar_select 0, %s16, %s14
  %v18 = vstv %s12
  %19 = vst [vmem:[#allocation2] sm:$0x1] %v18
  // Predicated region
  $region2: #{_forward_impl.1} parent=0 // pred_check
    _
  $region3: #{_forward_impl.1} parent=0 // pred_check_branch
    %21 = sbr.rel (0) target = $region5
  $region4: #{_forward_impl.1} parent=0 // pred_region
    _
  $region5: #{_forward_impl.1} parent=0 // pred_fallthru
    _
  // Predicated region
  $region6: #{_forward_impl.1} parent=0 // pred_check
    _
  $region7: #{_forward_impl.1} parent=0 // pred_check_branch
    %23 = sbr.rel (0) target = $region9
  $region8: #{_forward_impl.1} parent=0 // pred_region
    _
  $region9: #{_forward_impl.1} parent=0 // pred_fallthru
    _
  // Predicated region
  $region10: #{_forward_impl.1} parent=0 // pred_check
    _
  $region11: #{_forward_impl.1} parent=0 // pred_check_branch
    %25 = sbr.rel (0) target = $region13
  $region12: #{_forward_impl.1} parent=0 // pred_region
    _
  $region13: #{_forward_impl.1} parent=0 // pred_fallthru
    _
  // Predicated region
  $region14: #{_forward_impl.1} parent=0 // pred_check
    _
  $region15: #{_forward_impl.1} parent=0 // pred_check_branch
    %27 = sbr.rel (0) target = $region17
  $region16: #{_forward_impl.1} parent=0 // pred_region
    _
  $region17: #{_forward_impl.1} parent=0 // pred_fallthru
    _
  // Predicated region
  $region18: #{_forward_impl.1} parent=0 // pred_check
    _
  $region19: #{_forward_impl.1} parent=0 // pred_check_branch
    %29 = sbr.rel (0) target = $region21
  $region20: #{_forward_impl.1} parent=0 // pred_region
    _
  $region21: #{_forward_impl.1} parent=0 // pred_fallthru
    _
  // Predicated region
  $region22: #{_forward_impl.1} parent=0 // pred_check
    _
  $region23: #{_forward_impl.1} parent=0 // pred_check_branch
    %31 = sbr.rel (0) target = $region25
  $region24: #{_forward_impl.1} parent=0 // pred_region
    _
  $region25: #{_forward_impl.1} parent=0 // pred_fallthru
    _
  // Predicated region
  $region26: #{_forward_impl.1} parent=0 // pred_check
    _
  $region27: #{_forward_impl.1} parent=0 // pred_check_branch
    %33 = sbr.rel (0) target = $region29
  $region28: #{_forward_impl.1} parent=0 // pred_region
    _
  $region29: #{_forward_impl.1} parent=0 // pred_fallthru
    _
  // Predicated region
  $region30: #{_forward_impl.1} parent=0 // pred_check
    _
  $region31: #{_forward_impl.1} parent=0 // pred_check_branch
    %35 = sbr.rel (0) target = $region33
  $region32: #{_forward_impl.1} parent=0 // pred_region
    _
  $region33: #{_forward_impl.1} parent=0 // pred_fallthru
    _
  // Predicated region
  $region34: #{_forward_impl.1} parent=0 // pred_check
    _
  $region35: #{_forward_impl.1} parent=0 // pred_check_branch
    %37 = sbr.rel (0) target = $region37
  $region36: #{_forward_impl.1} parent=0 // pred_region
    _
  $region37: #{_forward_impl.1} parent=0 // pred_fallthru
    _
  // Predicated region
  $region38: #{_forward_impl.1} parent=0 // pred_check
    _
  $region39: #{_forward_impl.1} parent=0 // pred_check_branch
    %39 = sbr.rel (0) target = $region41
  $region40: #{_forward_impl.1} parent=0 // pred_region
    _
  $region41: #{_forward_impl.1} parent=0 // pred_fallthru
    _
  // Predicated region
  $region42: #{_forward_impl.1} parent=0 // pred_check
    _
  $region43: #{_forward_impl.1} parent=0 // pred_check_branch
    %41 = sbr.rel (0) target = $region45
  $region44: #{_forward_impl.1} parent=0 // pred_region
    _
  $region45: #{_forward_impl.1} parent=0 // pred_fallthru
    _
  // Predicated region
  $region46: #{_forward_impl.1} parent=0 // pred_check
    _
  $region47: #{_forward_impl.1} parent=0 // pred_check_branch
    %43 = sbr.rel (0) target = $region49
  $region48: #{_forward_impl.1} parent=0 // pred_region
    _
  $region49: #{_forward_impl.1} parent=0 // pred_fallthru
    _
  // Predicated region
  $region50: #{_forward_impl.1} parent=0 // pred_check
    _
  $region51: #{_forward_impl.1} parent=0 // pred_check_branch
    %45 = sbr.rel (0) target = $region53
  $region52: #{_forward_impl.1} parent=0 // pred_region
    _
  $region53: #{_forward_impl.1} parent=0 // pred_fallthru
    _
  %v47 = vld [vmem:[%s0] sm:$0xff]
  %v48 = vld [vmem:[%s0 + $0x8] sm:$0xff]
  %v49 = vpack.c.bf16 %v48, %v47
  %v50 = vld [vmem:[%s1] sm:$0xf]
  %v51 = vld [vmem:[%s1 + $0x4] sm:$0xf]
  %v52 = vld [vmem:[%s2] sm:$0xff]
  %v53 = vld [vmem:[%s2 + $0x8] sm:$0xff]
  %55 = vset.pattern.permute.xlu0 0
  %56 = vperm.xlu0 %55, %v52
  %v57 = vpop.permute.xlu0 %56
  %60 = vset.pattern.permute.xlu0 0
  %61 = vperm.xlu0 %60, %v53
  %v62 = vpop.permute.xlu0 %61
  %v66 = vunpack.c.l.b16 %v50
  %v67 = vunpack.c.l.b16 %v51
  %v68 = vpack.c.b16 %v67, %v66
  %vm69 = vcmask 261120
  %v71 = vsel %vm69, %v68, 0
  %v74 = vsel %vm69, %v49, 0
  %76 = vmatpush.bf16.xpose.msra.mxu0 0
  %77 = vmatpush.bf16.xpose.msra.mxu0 0
  %78 = vmatpush.bf16.xpose.msra.mxu0 0
  %79 = vmatpush.bf16.xpose.msra.mxu0 0
  %80 = vmatpush.bf16.xpose.msra.mxu0 0
  %81 = vmatpush.bf16.xpose.msra.mxu0 0
  %82 = vmatpush.bf16.xpose.msra.mxu0 0
  %83 = vmatpush.bf16.xpose.msra.mxu0 %v74
  %84 = vmatmul.bf16.gmra.mxu0 %v71
  %v85 = vpop.f32.mrf.mxu0
  %v86 = vadd.f32 %v57, %v85
  %v87 = vpop.f32.mrf.mxu0
  %v88 = vadd.f32 %v62, %v87
  %89 = vdwg.mxu0
  %v90 = vmax.f32 %v86, 0.0
  %v91 = vmax.f32 %v88, 0.0
  %v92 = vld [vmem:[%s3] sm:$0xf]
  %v93 = vpack.c.bf16 %v91, %v90
  %v94 = vld [vmem:[%s4] sm:$0xff]
  %96 = vset.pattern.permute.xlu0 0
  %97 = vperm.xlu0 %96, %v94
  %v98 = vpop.permute.xlu0 %97
  %vm100 = vcmask 130048
  %v102 = vsel %vm100, %v92, 0
  %104 = vmatpush.bf16.msra.mxu0 0
  %105 = vmatpush.bf16.msra.mxu0 0
  %106 = vmatpush.bf16.msra.mxu0 0
  %107 = vmatpush.bf16.msra.mxu0 0
  %108 = vmatpush.bf16.msra.mxu0 0
  %109 = vmatpush.bf16.msra.mxu0 0
  %110 = vmatpush.bf16.msra.mxu0 0
  %111 = vmatpush.bf16.msra.mxu0 %v93
  %112 = vmatmul.bf16.gmra.mxu0 %v102
  %v113 = vpop.f32.mrf.mxu0
  %v114 = vadd.f32 %v98, %v113
  %v115 = vpop.f32.mrf.mxu0
  %116 = vdwg.mxu0
  %v117 = vmax.f32 %v114, 0.0
  %v118 = vld [vmem:[%s5] sm:$0xf]
  %v119 = vld [vmem:[%s5 + $0x4] sm:$0xf]
  %v120 = vpack.c.bf16 %v117, %v117
  %v123 = vunpack.c.l.b16 %v118
  %v124 = vunpack.c.l.b16 %v119
  %v125 = vpack.c.b16 %v124, %v123
  %vm126 = vcmask 64512
  %v128 = vsel %vm126, %v125, 0
  %vm130 = vcmask 1043456
  %v132 = vsel %vm130, %v120, 0
  %134 = vmatpush.bf16.msra.mxu0 0
  %135 = vmatpush.bf16.msra.mxu0 0
  %136 = vmatpush.bf16.msra.mxu0 0
  %137 = vmatpush.bf16.msra.mxu0 0
  %138 = vmatpush.bf16.msra.mxu0 0
  %139 = vmatpush.bf16.msra.mxu0 0
  %140 = vmatpush.bf16.msra.mxu0 0
  %141 = vmatpush.bf16.msra.mxu0 %v132
  %142 = vmatmul.bf16.gmra.mxu0 %v128
  %v143 = vpop.f32.mrf.mxu0
  %v144 = vadd.f32 0.0, %v143
  %v145 = vpop.f32.mrf.mxu0
  %v146 = vadd.f32 0.0, %v145
  %147 = vdwg.mxu0
  %v148 = vadd.f32 %v90, %v144
  %v149 = vadd.f32 %v91, %v146
  %v150 = vld [vmem:[%s6] sm:$0xff]
  %v151 = vld [vmem:[%s6 + $0x8] sm:$0xff]
  %153 = vset.pattern.permute.xlu0 0
  %154 = vperm.xlu0 %153, %v150
  %v155 = vpop.permute.xlu0 %154
  %158 = vset.pattern.permute.xlu0 0
  %159 = vperm.xlu0 %158, %v151
  %v160 = vpop.permute.xlu0 %159
  %v162 = vadd.f32 %v148, %v155
  %v163 = vadd.f32 %v149, %v160
  %v164 = vmax.f32 %v162, 0.0
  %v165 = vmax.f32 %v163, 0.0
  %v166 = vld [vmem:[%s7] sm:$0xf]
  %v167 = vpack.c.bf16 %v165, %v164
  %v168 = vld [vmem:[%s8] sm:$0xff]
  %170 = vset.pattern.permute.xlu0 0
  %171 = vperm.xlu0 %170, %v168
  %v172 = vpop.permute.xlu0 %171
  %v175 = vsel %vm100, %v166, 0
  %177 = vmatpush.bf16.msra.mxu0 0
  %178 = vmatpush.bf16.msra.mxu0 0
  %179 = vmatpush.bf16.msra.mxu0 0
  %180 = vmatpush.bf16.msra.mxu0 0
  %181 = vmatpush.bf16.msra.mxu0 0
  %182 = vmatpush.bf16.msra.mxu0 0
  %183 = vmatpush.bf16.msra.mxu0 0
  %184 = vmatpush.bf16.msra.mxu0 %v167
  %185 = vmatmul.bf16.gmra.mxu0 %v175
  %v186 = vpop.f32.mrf.mxu0
  %v187 = vadd.f32 %v172, %v186
  %v188 = vpop.f32.mrf.mxu0
  %189 = vdwg.mxu0
  %v190 = vmax.f32 %v187, 0.0
  %v191 = vld [vmem:[%s9] sm:$0xf]
  %v192 = vld [vmem:[%s9 + $0x4] sm:$0xf]
  %v193 = vpack.c.bf16 %v190, %v190
  %v196 = vunpack.c.l.b16 %v191
  %v197 = vunpack.c.l.b16 %v192
  %v198 = vpack.c.b16 %v197, %v196
  %v200 = vsel %vm126, %v198, 0
  %v203 = vsel %vm130, %v193, 0
  %205 = vmatpush.bf16.msra.mxu0 0
  %206 = vmatpush.bf16.msra.mxu0 0
  %207 = vmatpush.bf16.msra.mxu0 0
  %208 = vmatpush.bf16.msra.mxu0 0
  %209 = vmatpush.bf16.msra.mxu0 0
  %210 = vmatpush.bf16.msra.mxu0 0
  %211 = vmatpush.bf16.msra.mxu0 0
  %212 = vmatpush.bf16.msra.mxu0 %v203
  %213 = vmatmul.bf16.gmra.mxu0 %v200
  %v214 = vpop.f32.mrf.mxu0
  %v215 = vadd.f32 0.0, %v214
  %v216 = vpop.f32.mrf.mxu0
  %v217 = vadd.f32 0.0, %v216
  %218 = vdwg.mxu0
  %v219 = vadd.f32 %v164, %v215
  %v220 = vadd.f32 %v165, %v217
  %v221 = vld [vmem:[%s10] sm:$0xff]
  %v222 = vld [vmem:[%s10 + $0x8] sm:$0xff]
  %224 = vset.pattern.permute.xlu0 0
  %225 = vperm.xlu0 %224, %v221
  %v226 = vpop.permute.xlu0 %225
  %229 = vset.pattern.permute.xlu0 0
  %230 = vperm.xlu0 %229, %v222
  %v231 = vpop.permute.xlu0 %230
  %v233 = vadd.f32 %v219, %v226
  %v234 = vadd.f32 %v220, %v231
  %v235 = vmax.f32 %v233, 0.0
  %v236 = vmax.f32 %v234, 0.0
  %v237 = vld [vmem:[%s11] sm:$0xff]
  %v238 = vld [vmem:[%s11 + $0x8] sm:$0xff]
  %240 = vset.pattern.permute.xlu0 0
  %241 = vperm.xlu0 %240, %v237
  %v242 = vpop.permute.xlu0 %241
  %245 = vset.pattern.permute.xlu0 0
  %246 = vperm.xlu0 %245, %v238
  %v247 = vpop.permute.xlu0 %246
  %v249 = vmul.f32 %v235, %v242
  %v250 = vmul.f32 %v236, %v247
  %v251 = vsel %vm100, %v249, 0.0
  %v252 = vsel %vm100, %v250, 0.0
  %v253 = vadd.f32 %v251, %v252
  %v254 = vrot.slane %v253, 4
  %v255 = vadd.f32 %v253, %v254
  %v256 = vrot.slane %v255, 2
  %v257 = vadd.f32 %v255, %v256
  %v258 = vrot.slane %v257, 1
  %v259 = vadd.f32 %v257, %v258
  %v260 = vld [vmem:[#allocation2] sm:$0x1]
  %262 = vset.pattern.permute.xlu0 0
  %263 = vperm.xlu0 %262, %v260
  %v264 = vpop.permute.xlu0 %263
  %v266 = vperm.slane %v264, 0
  %v267 = vadd.f32 %v259, %v266
  %vm268 = vcmask 122880
  %269 = vst.msk [vmem:[%s13] sm:$0x1] %vm268, %v267
  // Predicated region
  $region54: #{_forward_impl.1} parent=0 // pred_check
    _
  $region55: #{_forward_impl.1} parent=0 // pred_check_branch
    %271 = sbr.rel (0) target = $region57
  $region56: #{_forward_impl.1} parent=0 // pred_region
    _
  $region57: #{_forward_impl.1} parent=0 // pred_fallthru
    _
  // Predicated region
  $region58: #{_forward_impl.1} parent=0 // pred_check
    _
  $region59: #{_forward_impl.1} parent=0 // pred_check_branch
    %273 = sbr.rel (0) target = $region61
  $region60: #{_forward_impl.1} parent=0 // pred_region
    _
  $region61: #{_forward_impl.1} parent=0 // pred_fallthru
    _

</llo_original>
